<compile_context>
chip_gen: v5e
topology: v5e:2x2
jax: 0.10.0
libtpu: 0.0.40
codegen_flags: <defaults>
</compile_context>

<pallas_src>
import jax
import jax.numpy as jnp
from jax.experimental import pallas as pl
from jax.experimental.pallas import tpu as pltpu

STATE_DIM = 64
HIDDEN_DIM = 32
N_CHOICES = 19            # len([100, 150, ..., 1000])
PACK = 128                # lane-dense packed width (hidden + output slabs)
_NOUT = 2 * N_CHOICES + 1  # 39 real output lanes: x | y | value


def _round_up(x, m):
    return (x + m - 1) // m * m


def _actor_critic_kernel(state_ref, w1_ref, b1_ref, w2_ref, b2_ref, out_ref):
    s = state_ref[...]                                       # (bt, 64) f32

    # Fused first layer of all three heads: (bt,64) @ (64,128)
    h = jnp.dot(s, w1_ref[...], preferred_element_type=jnp.float32) + b1_ref[...]
    h = jnp.maximum(h, 0.0)                                  # ReLU

    # Fused block-diagonal second layer: (bt,128) @ (128,128)
    logits = jnp.dot(h, w2_ref[...], preferred_element_type=jnp.float32) + b2_ref[...]

    lane = jax.lax.broadcasted_iota(jnp.int32, logits.shape, 1)
    x_mask = lane < N_CHOICES
    y_mask = (lane >= N_CHOICES) & (lane < 2 * N_CHOICES)

    def masked_softmax(mask):
        masked_logits = jnp.where(mask, logits, jnp.float32(-1e30))
        m = jnp.max(masked_logits, axis=-1, keepdims=True)
        e = jnp.where(mask, jnp.exp(logits - m), 0.0)
        denom = jnp.sum(e, axis=-1, keepdims=True)
        r = pl.reciprocal(denom, approx=True)     # EUP vrcp (free slot)
        r = r * (2.0 - denom * r)                 # one Newton step -> ~exact
        return e * r

    px = masked_softmax(x_mask)
    py = masked_softmax(y_mask)

    # Lanes 0:19 x-probs, 19:38 y-probs, 38 value (raw logit), 39:128 zeros
    out_ref[...] = jnp.where(x_mask, px, jnp.where(y_mask, py, logits))


def pack_params(params):
    """Pack per-head weights into two lane-dense (padded to 128) matmuls."""
    H = HIDDEN_DIM
    w1 = jnp.zeros((STATE_DIM, PACK), jnp.float32)
    w1 = w1.at[:, 0 * H:1 * H].set(params["w1x"])
    w1 = w1.at[:, 1 * H:2 * H].set(params["w1y"])
    w1 = w1.at[:, 2 * H:3 * H].set(params["w1c"])

    b1 = jnp.zeros((1, PACK), jnp.float32)
    b1 = b1.at[:, 0 * H:1 * H].set(params["b1x"])
    b1 = b1.at[:, 1 * H:2 * H].set(params["b1y"])
    b1 = b1.at[:, 2 * H:3 * H].set(params["b1c"])

    w2 = jnp.zeros((PACK, PACK), jnp.float32)
    w2 = w2.at[0 * H:1 * H, 0:N_CHOICES].set(params["w2x"])
    w2 = w2.at[1 * H:2 * H, N_CHOICES:2 * N_CHOICES].set(params["w2y"])
    w2 = w2.at[2 * H:3 * H, 2 * N_CHOICES:_NOUT].set(params["w2c"])

    b2 = jnp.zeros((1, PACK), jnp.float32)
    b2 = b2.at[:, 0:N_CHOICES].set(params["b2x"])
    b2 = b2.at[:, N_CHOICES:2 * N_CHOICES].set(params["b2y"])
    b2 = b2.at[:, 2 * N_CHOICES:_NOUT].set(params["b2c"])
    return w1, b1, w2, b2


def tile_size_actor_critic_forward(state, packed, *, batch_tile=256):
    """state: [B, STATE_DIM] f32. packed: (w1, b1, w2, b2) from pack_params."""
    w1, b1, w2, b2 = packed
    B, D = state.shape
    assert D == STATE_DIM

    # Pick a large, sublane-aligned batch tile; pad ragged batches.
    bt = _round_up(min(batch_tile, _round_up(B, 8)), 8)
    B_pad = _round_up(B, bt)
    if B_pad != B:
        state = jnp.pad(state, ((0, B_pad - B), (0, 0)))
    grid = (B_pad // bt,)

    def full_spec(shape):
        return pl.BlockSpec(shape, lambda i, _s=shape: tuple(0 for _ in _s))

    out = pl.pallas_call(
        _actor_critic_kernel,
        out_shape=jax.ShapeDtypeStruct((B_pad, PACK), jnp.float32),
        grid_spec=pltpu.PrefetchScalarGridSpec(
            num_scalar_prefetch=0,
            grid=grid,
            in_specs=[
                pl.BlockSpec((bt, STATE_DIM), lambda i: (i, 0)),
                full_spec(w1.shape),
                full_spec(b1.shape),
                full_spec(w2.shape),
                full_spec(b2.shape),
            ],
            out_specs=pl.BlockSpec((bt, PACK), lambda i: (i, 0)),
        ),
        compiler_params=pltpu.CompilerParams(
            dimension_semantics=("parallel",),
        ),
    )(state, w1, b1, w2, b2)

    x_probs = out[:B, 0:N_CHOICES]
    y_probs = out[:B, N_CHOICES:2 * N_CHOICES]
    value = out[:B, 2 * N_CHOICES:_NOUT]
    return x_probs, y_probs, value


def init_params(key):
    """Deterministic init mimicking nn.Linear default (uniform +-1/sqrt(fan_in)).
    Weights are stored as [in_features, out_features]."""
    params = {}

    def linear(key, fan_in, fan_out):
        kw, kb = jax.random.split(key)
        bound = 1.0 / jnp.sqrt(fan_in)
        w = jax.random.uniform(kw, (fan_in, fan_out), jnp.float32, -bound, bound)
        b = jax.random.uniform(kb, (1, fan_out), jnp.float32, -bound, bound)
        return w, b

    keys = jax.random.split(key, 6)
    params["w1x"], params["b1x"] = linear(keys[0], STATE_DIM, HIDDEN_DIM)
    params["w2x"], params["b2x"] = linear(keys[1], HIDDEN_DIM, N_CHOICES)
    params["w1y"], params["b1y"] = linear(keys[2], STATE_DIM, HIDDEN_DIM)
    params["w2y"], params["b2y"] = linear(keys[3], HIDDEN_DIM, N_CHOICES)
    params["w1c"], params["b1c"] = linear(keys[4], STATE_DIM, HIDDEN_DIM)
    params["w2c"], params["b2c"] = linear(keys[5], HIDDEN_DIM, 1)
    return params


def reference_forward(state, params):
    def head(w1, b1, w2, b2):
        h = jnp.maximum(state @ w1 + b1, 0.0)
        return h @ w2 + b2

    lx = head(params["w1x"], params["b1x"], params["w2x"], params["b2x"])
    ly = head(params["w1y"], params["b1y"], params["w2y"], params["b2y"])
    v = head(params["w1c"], params["b1c"], params["w2c"], params["b2c"])
    return jax.nn.softmax(lx, axis=-1), jax.nn.softmax(ly, axis=-1), v


if __name__ == "__main__":
    key = jax.random.PRNGKey(0)
    k_params, k_state = jax.random.split(key)

    params = init_params(k_params)
    packed = pack_params(params)

    # Small aligned batch.
    batch = 8
    state = jax.random.normal(k_state, (batch, STATE_DIM), jnp.float32)
    x_probs, y_probs, value = tile_size_actor_critic_forward(state, packed)
    jax.block_until_ready((x_probs, y_probs, value))

    rx, ry, rv = reference_forward(state, params)
    assert jnp.allclose(x_probs, rx, atol=1e-5), "x_probs mismatch"
    assert jnp.allclose(y_probs, ry, atol=1e-5), "y_probs mismatch"
    assert jnp.allclose(value, rv, atol=1e-5), "value mismatch"
    assert jnp.allclose(jnp.sum(x_probs, axis=-1), 1.0, atol=1e-5)
    assert jnp.allclose(jnp.sum(y_probs, axis=-1), 1.0, atol=1e-5)

    # Ragged batch exercises the padding path.
    state5 = jax.random.normal(jax.random.PRNGKey(1), (5, STATE_DIM), jnp.float32)
    x5, y5, v5 = tile_size_actor_critic_forward(state5, packed)
    jax.block_until_ready((x5, y5, v5))
    rx5, ry5, rv5 = reference_forward(state5, params)
    assert jnp.allclose(x5, rx5, atol=1e-5) and jnp.allclose(y5, ry5, atol=1e-5)
    assert jnp.allclose(v5, rv5, atol=1e-5)

    print("KERNEL_OK")
</pallas_src>

<mosaic_0001>
module attributes {stable_mosaic.version = 11 : i64} {
  func.func @_actor_critic_kernel(%arg0: i32, %arg1: memref<8x64xf32, #tpu.memory_space<vmem>>, %arg2: memref<64x128xf32, #tpu.memory_space<vmem>>, %arg3: memref<1x128xf32, #tpu.memory_space<vmem>>, %arg4: memref<128x128xf32, #tpu.memory_space<vmem>>, %arg5: memref<1x128xf32, #tpu.memory_space<vmem>>, %arg6: memref<8x128xf32, #tpu.memory_space<vmem>>) attributes {dimension_semantics = [#tpu.dimension_semantics<parallel>], iteration_bounds = array<i64: 1>, scalar_prefetch = 0 : i64, scratch_operands = 0 : i64, tpu.core_type = #tpu.core_type<tc>, window_params = [{transform_indices = @transform_0, window_bounds = array<i64: 8, 64>}, {pipeline_mode = #tpu.pipeline_mode<synchronous>, transform_indices = @transform_1, window_bounds = array<i64: 64, 128>}, {pipeline_mode = #tpu.pipeline_mode<synchronous>, transform_indices = @transform_2, window_bounds = array<i64: 1, 128>}, {pipeline_mode = #tpu.pipeline_mode<synchronous>, transform_indices = @transform_3, window_bounds = array<i64: 128, 128>}, {pipeline_mode = #tpu.pipeline_mode<synchronous>, transform_indices = @transform_4, window_bounds = array<i64: 1, 128>}, {transform_indices = @transform_5, window_bounds = array<i64: 8, 128>}]} {
    %c0 = arith.constant 0 : index
    %c0_0 = arith.constant 0 : index
    %0 = vector.load %arg1[%c0, %c0_0] : memref<8x64xf32, #tpu.memory_space<vmem>>, vector<8x64xf32>
    %c0_1 = arith.constant 0 : index
    %c0_2 = arith.constant 0 : index
    %1 = vector.load %arg2[%c0_1, %c0_2] : memref<64x128xf32, #tpu.memory_space<vmem>>, vector<64x128xf32>
    %cst = arith.constant dense<0.000000e+00> : vector<8x128xf32>
    %2 = tpu.matmul %0, %1, %cst {dimension_numbers = #tpu.dot_dimension_numbers<[1], [0], [0], [1], [0, 0, 1, 1], [], []>} : vector<8x64xf32>, vector<64x128xf32>, vector<8x128xf32> -> vector<8x128xf32>
    %c0_3 = arith.constant 0 : index
    %c0_4 = arith.constant 0 : index
    %3 = vector.load %arg3[%c0_3, %c0_4] : memref<1x128xf32, #tpu.memory_space<vmem>>, vector<1x128xf32>
    %4 = vector.broadcast %3 : vector<1x128xf32> to vector<8x128xf32>
    %5 = arith.addf %2, %4 : vector<8x128xf32>
    %cst_5 = arith.constant 0.000000e+00 : f32
    %6 = vector.broadcast %cst_5 : f32 to vector<8x128xf32>
    %7 = arith.maximumf %5, %6 : vector<8x128xf32>
    %c0_6 = arith.constant 0 : index
    %c0_7 = arith.constant 0 : index
    %8 = vector.load %arg4[%c0_6, %c0_7] : memref<128x128xf32, #tpu.memory_space<vmem>>, vector<128x128xf32>
    %cst_8 = arith.constant dense<0.000000e+00> : vector<8x128xf32>
    %9 = tpu.matmul %7, %8, %cst_8 {dimension_numbers = #tpu.dot_dimension_numbers<[1], [0], [0], [1], [0, 0, 1, 1], [], []>} : vector<8x128xf32>, vector<128x128xf32>, vector<8x128xf32> -> vector<8x128xf32>
    %c0_9 = arith.constant 0 : index
    %c0_10 = arith.constant 0 : index
    %10 = vector.load %arg5[%c0_9, %c0_10] : memref<1x128xf32, #tpu.memory_space<vmem>>, vector<1x128xf32>
    %11 = vector.broadcast %10 : vector<1x128xf32> to vector<8x128xf32>
    %12 = arith.addf %9, %11 : vector<8x128xf32>
    %13 = tpu.iota {dimensions = array<i32: 1>} : vector<8x128xi32>
    %c19_i32 = arith.constant 19 : i32
    %14 = vector.broadcast %c19_i32 : i32 to vector<8x128xi32>
    %15 = arith.cmpi slt, %13, %14 : vector<8x128xi32>
    %c19_i32_11 = arith.constant 19 : i32
    %16 = vector.broadcast %c19_i32_11 : i32 to vector<8x128xi32>
    %17 = arith.cmpi sge, %13, %16 : vector<8x128xi32>
    %c38_i32 = arith.constant 38 : i32
    %18 = vector.broadcast %c38_i32 : i32 to vector<8x128xi32>
    %19 = arith.cmpi slt, %13, %18 : vector<8x128xi32>
    %20 = arith.andi %17, %19 : vector<8x128xi1>
    %cst_12 = arith.constant -1.000000e+30 : f32
    %21 = vector.broadcast %cst_12 : f32 to vector<8x128xf32>
    %22 = arith.select %15, %12, %21 : vector<8x128xi1>, vector<8x128xf32>
    %cst_13 = arith.constant dense<0xFF800000> : vector<8xf32>
    %23 = vector.multi_reduction <maximumf>, %22, %cst_13 [1] : vector<8x128xf32> to vector<8xf32>
    %24 = vector.shape_cast %23 : vector<8xf32> to vector<8x1xf32>
    %25 = vector.broadcast %24 : vector<8x1xf32> to vector<8x128xf32>
    %26 = arith.subf %12, %25 : vector<8x128xf32>
    %27 = math.exp %26 : vector<8x128xf32>
    %cst_14 = arith.constant 0.000000e+00 : f32
    %28 = vector.broadcast %cst_14 : f32 to vector<8x128xf32>
    %29 = arith.select %15, %27, %28 : vector<8x128xi1>, vector<8x128xf32>
    %cst_15 = arith.constant dense<0.000000e+00> : vector<8xf32>
    %30 = vector.multi_reduction <add>, %29, %cst_15 [1] : vector<8x128xf32> to vector<8xf32>
    %31 = vector.shape_cast %30 : vector<8xf32> to vector<8x1xf32>
    %32 = tpu.reciprocal %31 {approx = true} : vector<8x1xf32> -> vector<8x1xf32>
    %33 = arith.mulf %31, %32 : vector<8x1xf32>
    %cst_16 = arith.constant 2.000000e+00 : f32
    %34 = vector.broadcast %cst_16 : f32 to vector<8x1xf32>
    %35 = arith.subf %34, %33 : vector<8x1xf32>
    %36 = arith.mulf %32, %35 : vector<8x1xf32>
    %37 = vector.broadcast %36 : vector<8x1xf32> to vector<8x128xf32>
    %38 = arith.mulf %29, %37 : vector<8x128xf32>
    %cst_17 = arith.constant -1.000000e+30 : f32
    %39 = vector.broadcast %cst_17 : f32 to vector<8x128xf32>
    %40 = arith.select %20, %12, %39 : vector<8x128xi1>, vector<8x128xf32>
    %cst_18 = arith.constant dense<0xFF800000> : vector<8xf32>
    %41 = vector.multi_reduction <maximumf>, %40, %cst_18 [1] : vector<8x128xf32> to vector<8xf32>
    %42 = vector.shape_cast %41 : vector<8xf32> to vector<8x1xf32>
    %43 = vector.broadcast %42 : vector<8x1xf32> to vector<8x128xf32>
    %44 = arith.subf %12, %43 : vector<8x128xf32>
    %45 = math.exp %44 : vector<8x128xf32>
    %cst_19 = arith.constant 0.000000e+00 : f32
    %46 = vector.broadcast %cst_19 : f32 to vector<8x128xf32>
    %47 = arith.select %20, %45, %46 : vector<8x128xi1>, vector<8x128xf32>
    %cst_20 = arith.constant dense<0.000000e+00> : vector<8xf32>
    %48 = vector.multi_reduction <add>, %47, %cst_20 [1] : vector<8x128xf32> to vector<8xf32>
    %49 = vector.shape_cast %48 : vector<8xf32> to vector<8x1xf32>
    %50 = tpu.reciprocal %49 {approx = true} : vector<8x1xf32> -> vector<8x1xf32>
    %51 = arith.mulf %49, %50 : vector<8x1xf32>
    %cst_21 = arith.constant 2.000000e+00 : f32
    %52 = vector.broadcast %cst_21 : f32 to vector<8x1xf32>
    %53 = arith.subf %52, %51 : vector<8x1xf32>
    %54 = arith.mulf %50, %53 : vector<8x1xf32>
    %55 = vector.broadcast %54 : vector<8x1xf32> to vector<8x128xf32>
    %56 = arith.mulf %47, %55 : vector<8x128xf32>
    %57 = arith.select %20, %56, %12 : vector<8x128xi1>, vector<8x128xf32>
    %58 = arith.select %15, %38, %57 : vector<8x128xi1>, vector<8x128xf32>
    %c0_22 = arith.constant 0 : index
    %c0_23 = arith.constant 0 : index
    %59 = vector.load %arg6[%c0_22, %c0_23] : memref<8x128xf32, #tpu.memory_space<vmem>>, vector<8x128xf32>
    tpu.vector_store %arg6[%c0_22, %c0_23], %58 {strides = array<i32>} : memref<8x128xf32, #tpu.memory_space<vmem>>, vector<8x128xf32>,
    return
  }
  func.func @transform_0(%arg0: i32) -> (i32, i32) {
    %c0_i32 = arith.constant 0 : i32
    %c0_i32_0 = arith.constant 0 : i32
    return %arg0, %c0_i32 : i32, i32
  }
  func.func @transform_1(%arg0: i32) -> (i32, i32) {
    %c0_i32 = arith.constant 0 : i32
    %c0_i32_0 = arith.constant 0 : i32
    %c0_i32_1 = arith.constant 0 : i32
    return %c0_i32, %c0_i32_0 : i32, i32
  }
  func.func @transform_2(%arg0: i32) -> (i32, i32) {
    %c0_i32 = arith.constant 0 : i32
    %c0_i32_0 = arith.constant 0 : i32
    %c0_i32_1 = arith.constant 0 : i32
    return %c0_i32, %c0_i32_0 : i32, i32
  }
  func.func @transform_3(%arg0: i32) -> (i32, i32) {
    %c0_i32 = arith.constant 0 : i32
    %c0_i32_0 = arith.constant 0 : i32
    %c0_i32_1 = arith.constant 0 : i32
    return %c0_i32, %c0_i32_0 : i32, i32
  }
  func.func @transform_4(%arg0: i32) -> (i32, i32) {
    %c0_i32 = arith.constant 0 : i32
    %c0_i32_0 = arith.constant 0 : i32
    %c0_i32_1 = arith.constant 0 : i32
    return %c0_i32, %c0_i32_0 : i32, i32
  }
  func.func @transform_5(%arg0: i32) -> (i32, i32) {
    %c0_i32 = arith.constant 0 : i32
    %c0_i32_0 = arith.constant 0 : i32
    return %arg0, %c0_i32 : i32, i32
  }
}

</mosaic_0001>

<llo_original>
// kernel: tpu_custom_call.1
$region0: #{tpu_custom_call.1}
  #allocation0 [shape = 'u32[]', space=smem, size = 0x4, offset = 0x4, fixed_abs, tag = 'smem constant byte address 0x4 - core index']
  #allocation1 [shape = 'u32[72,128]{1,0:T(1,128)}', space=vmem, size = 0x9000, scoped, tag = 'internal scratch']
  %s0 = inlined_call_operand.hbm [shape: f32[8,64], index: 0, kind: input, shape index: {}]
  %s1 = inlined_call_operand.hbm [shape: f32[64,128], index: 1, kind: input, shape index: {}]
  %s2 = inlined_call_operand.vmem [shape: f32[1,128], index: 2, kind: input, shape index: {}]
  %s3 = inlined_call_operand.hbm [shape: f32[128,128], index: 3, kind: input, shape index: {}]
  %s4 = inlined_call_operand.vmem [shape: f32[1,128], index: 4, kind: input, shape index: {}]
  %s5 = inlined_call_operand.hbm [shape: f32[8,128], index: 5, kind: output, shape index: {}]
  %s6 = sld [smem:[#allocation0]]
  $region42: #{tpu_custom_call.1} parent=0
    _
  %s8 = ssub.s32 1, %s6
  %s9 = scalar_select 0, %s8, %s6
  $region1: #{tpu_custom_call.1} parent=0
    #allocation2 [shape = 'u8[4096]{0}', space=vmem, size = 0x1000, scoped, tag = 'input window, operand 0, single buffered']
    #allocation3 [shape = 's32[1]{0}', space=sflag, size = 0x4, scoped, tag = 'scoped memory for tpu_custom_call.1']
    #allocation4 [shape = 's32[1]{0}', space=sflag, size = 0x4, scoped, tag = 'scoped memory for tpu_custom_call.1']
    #allocation5 [shape = 'u8[32768]{0}', space=vmem, size = 0x8000, scoped, tag = 'input window, operand 1, single buffered']
    #allocation6 [shape = 's32[1]{0}', space=sflag, size = 0x4, scoped, tag = 'scoped memory for tpu_custom_call.1']
    #allocation7 [shape = 'u8[65536]{0}', space=vmem, size = 0x10000, scoped, tag = 'input window, operand 3, single buffered']
    #allocation8 [shape = 'u8[4096]{0}', space=vmem, size = 0x1000, scoped, tag = 'output window, operand 0, single buffered']
    %10 = vsyncpa [#allocation3], 0
    %11 = vsyncpa [#allocation6], 0
    %12 = vsyncpa [#allocation4], 0
    // Predicated region
    $region2: #{tpu_custom_call.1} parent=1 // pred_check
      _
    $region3: #{tpu_custom_call.1} parent=1 // pred_check_branch
      %14 = sbr.rel (0) target = $region5
    $region4: #{tpu_custom_call.1} parent=1 // pred_region
      %16 = vsyncadd [#allocation3], 0
      %s18 = sshll.u32 %s0, 4
      %s19 = int_to_ptr.hbm [resolvable:$true] %s18
      %s20 = sshll.u32 [#allocation2], 4
      %s21 = int_to_ptr.vmem [resolvable:$true] %s20
      %23 = dma.hbm_to_vmem [thread:$0]  %s19, 128, %s21, [#allocation3]
    $region5: #{tpu_custom_call.1} parent=1 // pred_fallthru
      _
    // Predicated region
    $region6: #{tpu_custom_call.1} parent=1 // pred_check
      _
    $region7: #{tpu_custom_call.1} parent=1 // pred_check_branch
      %25 = sbr.rel (0) target = $region9
    $region8: #{tpu_custom_call.1} parent=1 // pred_region
      %27 = vsyncadd [#allocation6], 0
      %s28 = sshll.u32 %s1, 4
      %s29 = int_to_ptr.hbm [resolvable:$true] %s28
      %s30 = sshll.u32 [#allocation5], 4
      %s31 = int_to_ptr.vmem [resolvable:$true] %s30
      %36 = dma.hbm_to_vmem [thread:$0]  %s29, 1024, %s31, [#allocation6], 128, 128, 8
    $region9: #{tpu_custom_call.1} parent=1 // pred_fallthru
      _
    // Predicated region
    $region10: #{tpu_custom_call.1} parent=1 // pred_check
      _
    $region11: #{tpu_custom_call.1} parent=1 // pred_check_branch
      %38 = sbr.rel (0) target = $region13
    $region12: #{tpu_custom_call.1} parent=1 // pred_region
      _
    $region13: #{tpu_custom_call.1} parent=1 // pred_fallthru
      _
    // Predicated region
    $region14: #{tpu_custom_call.1} parent=1 // pred_check
      _
    $region15: #{tpu_custom_call.1} parent=1 // pred_check_branch
      %40 = sbr.rel (0) target = $region17
    $region16: #{tpu_custom_call.1} parent=1 // pred_region
      %42 = vsyncadd [#allocation6], 0
      %s43 = sshll.u32 %s3, 4
      %s44 = int_to_ptr.hbm [resolvable:$true] %s43
      %s45 = sshll.u32 [#allocation7], 4
      %s46 = int_to_ptr.vmem [resolvable:$true] %s45
      %51 = dma.hbm_to_vmem [thread:$0]  %s44, 2048, %s46, [#allocation6], 128, 128, 8
    $region17: #{tpu_custom_call.1} parent=1 // pred_fallthru
      _
    // Predicated region
    $region18: #{tpu_custom_call.1} parent=1 // pred_check
      _
    $region19: #{tpu_custom_call.1} parent=1 // pred_check_branch
      %53 = sbr.rel (0) target = $region21
    $region20: #{tpu_custom_call.1} parent=1 // pred_region
      _
    $region21: #{tpu_custom_call.1} parent=1 // pred_fallthru
      _
    // Predicated region
    $region22: #{tpu_custom_call.1} parent=1 // pred_check
      _
    $region23: #{tpu_custom_call.1} parent=1 // pred_check_branch
      %55 = sbr.rel (0) target = $region25
    $region24: #{tpu_custom_call.1} parent=1 // pred_region
      %57 = dma.done [#allocation3], 128
    $region25: #{tpu_custom_call.1} parent=1 // pred_fallthru
      _
    // Predicated region
    $region26: #{tpu_custom_call.1} parent=1 // pred_check
      _
    $region27: #{tpu_custom_call.1} parent=1 // pred_check_branch
      %59 = sbr.rel (0) target = $region29
    $region28: #{tpu_custom_call.1} parent=1 // pred_region
      %61 = dma.done [#allocation6], 1024
    $region29: #{tpu_custom_call.1} parent=1 // pred_fallthru
      _
    // Predicated region
    $region30: #{tpu_custom_call.1} parent=1 // pred_check
      _
    $region31: #{tpu_custom_call.1} parent=1 // pred_check_branch
      %63 = sbr.rel (0) target = $region33
    $region32: #{tpu_custom_call.1} parent=1 // pred_region
      %65 = dma.done [#allocation6], 2048
    $region33: #{tpu_custom_call.1} parent=1 // pred_fallthru
      _
    %v66 = vld [vmem:[#allocation2] sm:$0xff]
    %v67 = vld [vmem:[#allocation5] sm:$0xff]
    %v68 = vld [vmem:[#allocation5 + $0x8] sm:$0xff]
    %v69 = vld [vmem:[#allocation5 + $0x10] sm:$0xff]
    %v70 = vld [vmem:[#allocation5 + $0x18] sm:$0xff]
    %v71 = vld [vmem:[#allocation5 + $0x20] sm:$0xff]
    %v72 = vld [vmem:[#allocation5 + $0x28] sm:$0xff]
    %v73 = vld [vmem:[#allocation5 + $0x30] sm:$0xff]
    %v74 = vld [vmem:[#allocation5 + $0x38] sm:$0xff]
    %v75 = vld [vmem:[%s2] sm:$0x1]
    %v77 = vperm.slane %v75, 0
    %vm79 = vcmask 523264
    %v81 = vsel %vm79, %v66, 0
    %83 = vmatpush.msra.mxu0 0.0
    %84 = vmatpush.msra.mxu0 0.0
    %85 = vmatpush.msra.mxu0 0.0
    %86 = vmatpush.msra.mxu0 0.0
    %87 = vmatpush.msra.mxu0 0.0
    %88 = vmatpush.msra.mxu0 0.0
    %89 = vmatpush.msra.mxu0 0.0
    %90 = vmatpush.msra.mxu0 0.0
    %91 = vmatpush.msra.mxu0 %v74
    %92 = vmatpush.msra.mxu0 %v73
    %93 = vmatpush.msra.mxu0 %v72
    %94 = vmatpush.msra.mxu0 %v71
    %95 = vmatpush.msra.mxu0 %v70
    %96 = vmatpush.msra.mxu0 %v69
    %97 = vmatpush.msra.mxu0 %v68
    %98 = vmatpush.msra.mxu0 %v67
    %99 = vmatmul.f32.gmra.mxu0 %v81
    %v100 = vpop.f32.mrf.mxu0
    %v101 = vadd.f32 %v77, %v100
    %102 = vdwg.mxu0
    %v103 = vmax.f32 %v101, 0.0
    %v104 = vld [vmem:[#allocation7] sm:$0xff]
    %v105 = vld [vmem:[#allocation7 + $0x8] sm:$0xff]
    %v106 = vld [vmem:[#allocation7 + $0x10] sm:$0xff]
    %v107 = vld [vmem:[#allocation7 + $0x18] sm:$0xff]
    %v108 = vld [vmem:[#allocation7 + $0x20] sm:$0xff]
    %v109 = vld [vmem:[#allocation7 + $0x28] sm:$0xff]
    %v110 = vld [vmem:[#allocation7 + $0x30] sm:$0xff]
    %v111 = vld [vmem:[#allocation7 + $0x38] sm:$0xff]
    %v112 = vld [vmem:[#allocation7 + $0x40] sm:$0xff]
    %v113 = vld [vmem:[#allocation7 + $0x48] sm:$0xff]
    %v114 = vld [vmem:[#allocation7 + $0x50] sm:$0xff]
    %v115 = vld [vmem:[#allocation7 + $0x58] sm:$0xff]
    %v116 = vld [vmem:[#allocation7 + $0x60] sm:$0xff]
    %v117 = vld [vmem:[#allocation7 + $0x68] sm:$0xff]
    %v118 = vld [vmem:[#allocation7 + $0x70] sm:$0xff]
    %v119 = vld [vmem:[#allocation7 + $0x78] sm:$0xff]
    %v120 = vld [vmem:[%s4] sm:$0x1]
    %v122 = vperm.slane %v120, 0
    %124 = vmatpush.msra.mxu0 %v119
    %125 = vmatpush.msra.mxu0 %v118
    %126 = vmatpush.msra.mxu0 %v117
    %127 = vmatpush.msra.mxu0 %v116
    %128 = vmatpush.msra.mxu0 %v115
    %129 = vmatpush.msra.mxu0 %v114
    %130 = vmatpush.msra.mxu0 %v113
    %131 = vmatpush.msra.mxu0 %v112
    %132 = vmatpush.msra.mxu0 %v111
    %133 = vmatpush.msra.mxu0 %v110
    %134 = vmatpush.msra.mxu0 %v109
    %135 = vmatpush.msra.mxu0 %v108
    %136 = vmatpush.msra.mxu0 %v107
    %137 = vmatpush.msra.mxu0 %v106
    %138 = vmatpush.msra.mxu0 %v105
    %139 = vmatpush.msra.mxu0 %v104
    %140 = vmatmul.f32.gmra.mxu0 %v103
    %v141 = vpop.f32.mrf.mxu0
    %v142 = vadd.f32 %v122, %v141
    %143 = vdwg.mxu0
    %v144 = vlaneseq
    %v145 = vand.u32 %v144, 127
    %vm146 = vcmp.lt.s32.totalorder %v145, 19
    %vm147 = vcmp.ge.s32.totalorder %v145, 19
    %vm148 = vcmp.lt.s32.totalorder %v145, 38
    %vm149 = vmand %vm147, %vm148
    %v150 = vsel %vm146, %v142, -1e+30
    %151 = vmax.xlane.f32.xlu0 %v150
    %v152 = vpop.xlane.xlu0 %151
    %v153 = vsub.f32 %v142, %v152
    %v154 = vmul.f32 %v153, 1.442695
    %v155 = vpow.pop %v154
    %v156 = vsel %vm146, %v155, 0.0
    %157 = vadd.xlane.f32.xlu0 %v156
    %v158 = vpop.xlane.xlu0 %157
    %v159 = vrcp.pop %v158
    %v160 = vmul.f32 %v158, %v159
    %v161 = vsub.f32 2.0, %v160
    %v162 = vmul.f32 %v159, %v161
    %v163 = vmul.f32 %v156, %v162
    %v164 = vsel %vm149, %v142, -1e+30
    %165 = vmax.xlane.f32.xlu0 %v164
    %v166 = vpop.xlane.xlu0 %165
    %v167 = vsub.f32 %v142, %v166
    %v168 = vmul.f32 %v167, 1.442695
    %v169 = vpow.pop %v168
    %v170 = vsel %vm149, %v169, 0.0
    %171 = vadd.xlane.f32.xlu0 %v170
    %v172 = vpop.xlane.xlu0 %171
    %v173 = vrcp.pop %v172
    %v174 = vmul.f32 %v172, %v173
    %v175 = vsub.f32 2.0, %v174
    %v176 = vmul.f32 %v173, %v175
    %v177 = vmul.f32 %v170, %v176
    %v178 = vsel %vm149, %v177, %v142
    %v179 = vsel %vm146, %v163, %v178
    %180 = vst [vmem:[#allocation8] sm:$0xff] %v179
    // Predicated region
    $region34: #{tpu_custom_call.1} parent=1 // pred_check
      _
    $region35: #{tpu_custom_call.1} parent=1 // pred_check_branch
      %182 = sbr.rel (0) target = $region37
    $region36: #{tpu_custom_call.1} parent=1 // pred_region
      %184 = vsyncadd [#allocation4], 0
      %s186 = sshll.u32 [#allocation8], 4
      %s187 = int_to_ptr.vmem [resolvable:$true] %s186
      %s188 = sshll.u32 %s5, 4
      %s189 = int_to_ptr.hbm [resolvable:$true] %s188
      %191 = dma.vmem_to_hbm [thread:$0]  %s187, 128, %s189, [#allocation4]
    $region37: #{tpu_custom_call.1} parent=1 // pred_fallthru
      _
    // Predicated region
    $region38: #{tpu_custom_call.1} parent=1 // pred_check
      _
    $region39: #{tpu_custom_call.1} parent=1 // pred_check_branch
      %193 = sbr.rel (0) target = $region41
    $region40: #{tpu_custom_call.1} parent=1 // pred_region
      %195 = dma.done [#allocation4], 128
    $region41: #{tpu_custom_call.1} parent=1 // pred_fallthru
      _
    %196 = vsyncpa [#allocation3], 1
    %197 = vsyncpa [#allocation6], 1
    %198 = vsyncpa [#allocation4], 1

</llo_original>
